<compile_context>
chip_gen: v7x
topology: tpu7x:2x2x1
jax: 0.10.0
libtpu: 0.0.40
codegen_flags: <defaults>
</compile_context>

<pallas_src>
import warnings

import jax
import jax.numpy as jnp
from jax.experimental import pallas as pl
from jax.experimental.pallas import tpu as pltpu

# If donation cannot be honoured JAX only emits a benign UserWarning (XLA falls back to
# an internal copy); silence it so the script's output stays clean.
warnings.filterwarnings("ignore", message="Some donated buffers were not usable")


def _copy_kernel(fx_ref, o_ref):
    # Identity on the FX parameter tile (output buffer aliases the FX buffer).
    o_ref[...] = fx_ref[...]


_LANE = 128
# No-grid single-block path only when the padded per-buffer VMEM footprint is tiny.
_SINGLE_BLOCK_VMEM_BYTES = 512 << 10      # 512 KiB per buffer (1 MiB for in + out)
# Tiled path: ~4 MiB padded per buffer per block; x2 double-buffer x (in+out) ~= 16 MiB.
_TARGET_BLOCK_BYTES = 4 << 20
_VMEM_LIMIT_BYTES = 32 << 20
_MAX_COL_BLOCK = 512                      # lanes per column block when output_dim is wide


def _round_up(n, m):
    return -(-n // m) * m


def lgb_module_forward(fx):
    """Training-mode forward of LGBModule: materialize/return the FX parameter.

    fx : (batch, output_dim) learnable parameter. Returned through an aliased Pallas
    identity kernel (the output buffer is FX's own buffer when FX is donated).
    """
    batch, out_dim = fx.shape
    itemsize = fx.dtype.itemsize
    sublane = max(8, 32 // itemsize)              # f32: 8, bf16: 16, int8/fp8: 32
    padded_rows = _round_up(batch, sublane)
    padded_cols = _round_up(out_dim, _LANE)
    footprint = padded_rows * padded_cols * itemsize   # per-buffer VMEM bytes

    # --- Small case (covers the tested (16, 3) shape): one whole-array block, no grid.
    if footprint <= _SINGLE_BLOCK_VMEM_BYTES:
        return pl.pallas_call(
            _copy_kernel,
            out_shape=jax.ShapeDtypeStruct((batch, out_dim), fx.dtype),
            input_output_aliases={0: 0},
        )(fx)

    # --- Large case: tile (batch, output_dim) directly. No wrapper-side pad / reshape /
    # slice; partial trailing blocks are handled by Pallas masking (pl.cdiv grid).
    if padded_cols <= _MAX_COL_BLOCK:
        bc, bc_pad = out_dim, padded_cols          # full (lane-padded) width per block
    else:
        bc = bc_pad = _MAX_COL_BLOCK               # 512-lane column blocks

    # Row block sized to ~_TARGET_BLOCK_BYTES of padded VMEM per buffer, but no larger
    # than needed to keep >=4 row blocks (feeds both v7x TensorCores) as long as the
    # block stays >= ~1 MiB padded.
    br = max(sublane, (_TARGET_BLOCK_BYTES // (bc_pad * itemsize)) // sublane * sublane)
    rows_quarter = _round_up(pl.cdiv(batch, 4), sublane)
    rows_1mb = _round_up(max(1, (1 << 20) // (bc_pad * itemsize)), sublane)
    br = min(br, max(rows_quarter, rows_1mb, sublane))
    br = min(br, _round_up(batch, sublane))

    grid = (pl.cdiv(batch, br), pl.cdiv(out_dim, bc))
    return pl.pallas_call(
        _copy_kernel,
        out_shape=jax.ShapeDtypeStruct((batch, out_dim), fx.dtype),
        grid=grid,
        in_specs=[pl.BlockSpec((br, bc), lambda i, j: (i, j))],
        out_specs=pl.BlockSpec((br, bc), lambda i, j: (i, j)),
        input_output_aliases={0: 0},
        compiler_params=pltpu.CompilerParams(
            dimension_semantics=("parallel", "parallel"),
            vmem_limit_bytes=_VMEM_LIMIT_BYTES,
        ),
    )(fx)


# Donating FX lets XLA honour the kernel's input/output alias: the module output IS the
# FX buffer, matching the PyTorch module which returns the parameter tensor itself.
_forward_jit = jax.jit(lgb_module_forward, donate_argnums=(0,))


class WrapperPallas:
    """Mirrors gbnet/tests/test_lgbmodule.py::Wrapper around LGBModule."""

    def __init__(self, batch_size, input_dim, output_dim):
        self.batch_size = batch_size
        self.input_dim = input_dim
        self.output_dim = output_dim
        # LGBModule.__init__: self.FX = nn.Parameter(torch.zeros(batch_size, output_dim))
        self.FX = jnp.zeros((batch_size, output_dim), dtype=jnp.float32)
        self._cached_input = None  # stands in for self.input_array

    def forward(self, x):
        # Caching of x is pure Python/host state in the reference module; it does not
        # enter the returned tensor in training mode.
        self._cached_input = x
        out = _forward_jit(self.FX)
        # FX was donated and the output aliases its buffer; rebind so the parameter
        # stays valid (reference-return semantics, no extra copy).
        self.FX = out
        return out

    def gb_step(self):
        # TODO(synk): LightGBM boosting step (tree fitting on cached grads/hess) has no
        # Pallas equivalent; left unimplemented.
        pass


if __name__ == "__main__":
    batch_size, input_dim, output_dim = 16, 4, 3

    key = jax.random.PRNGKey(0)
    x = jax.random.normal(key, (batch_size, input_dim), dtype=jnp.float32)

    module = WrapperPallas(batch_size, input_dim, output_dim)
    out = jax.block_until_ready(module.forward(x))
    assert out.shape == (batch_size, output_dim), out.shape
    assert out.dtype == jnp.float32
    # Freshly-initialized LGBModule returns its zero-initialized FX parameter.
    assert bool(jnp.all(out == 0.0))

    # Batch size NOT divisible by 8 (exercises the masked whole-array block path).
    module2 = WrapperPallas(10, input_dim, output_dim)
    out2 = jax.block_until_ready(module2.forward(x[:10]))
    assert out2.shape == (10, output_dim)
    assert bool(jnp.all(out2 == 0.0))

    # Larger batch with a narrow output_dim: padded-VMEM-footprint routing sends this
    # through the tiled path (no wrapper pad/slice, aliased output, pl.cdiv grid).
    module3 = WrapperPallas(2048, input_dim, output_dim)
    x3 = jax.random.normal(jax.random.PRNGKey(1), (2048, input_dim), dtype=jnp.float32)
    out3 = jax.block_until_ready(module3.forward(x3))
    assert out3.shape == (2048, output_dim)
    assert bool(jnp.all(out3 == 0.0))

    print("KERNEL_OK")
</pallas_src>

<mosaic_0001>
module attributes {stable_mosaic.version = 11 : i64} {
  func.func @_copy_kernel(%arg0: memref<16x3xf32, #tpu.memory_space<vmem>>, %arg1: memref<16x3xf32, #tpu.memory_space<vmem>>) attributes {dimension_semantics = [], scalar_prefetch = 0 : i64, scratch_operands = 0 : i64, tpu.core_type = #tpu.core_type<tc>} {
    %c0 = arith.constant 0 : index
    %c0_0 = arith.constant 0 : index
    %0 = vector.load %arg0[%c0, %c0_0] : memref<16x3xf32, #tpu.memory_space<vmem>>, vector<16x3xf32>
    %c0_1 = arith.constant 0 : index
    %c0_2 = arith.constant 0 : index
    %1 = vector.load %arg1[%c0_1, %c0_2] : memref<16x3xf32, #tpu.memory_space<vmem>>, vector<16x3xf32>
    tpu.vector_store %arg1[%c0_1, %c0_2], %0 {strides = array<i32>} : memref<16x3xf32, #tpu.memory_space<vmem>>, vector<16x3xf32>,
    return
  }
}

</mosaic_0001>

<llo_original>
// kernel: lgb_module_forward.1
$region0: #{lgb_module_forward.1}
  #allocation0 [shape = 'u32[]', space=smem, size = 0x4, offset = 0x4, fixed_abs, tag = 'smem constant byte address 0x4 - core index']
  #allocation1 [shape = 'u32[144,128]{1,0:T(1,128)}', space=vmem, size = 0x12000, scoped, tag = 'internal scratch']
  %s0 = inlined_call_operand.vmem [shape: f32[16,3], index: 0, kind: input, shape index: {}, may-alias: {0,1}]
  %s1 = inlined_call_operand.vmem [shape: f32[16,3], index: 1, kind: output, shape index: {}, may-alias: {0,1}]
  %s2 = sld [smem:[#allocation0]]
  $region14: #{lgb_module_forward.1} parent=0
    _
  %s4 = ssub.s32 1, %s2
  %s5 = scalar_select 0, %s4, %s2
  // Predicated region
  $region2: #{lgb_module_forward.1} parent=0 // pred_check
    _
  $region3: #{lgb_module_forward.1} parent=0 // pred_check_branch
    %7 = sbr.rel (0) target = $region5
  $region4: #{lgb_module_forward.1} parent=0 // pred_region
    _
  $region5: #{lgb_module_forward.1} parent=0 // pred_fallthru
    _
  %v8 = vld [vmem:[%s0] sm:$0xff]
  %v9 = vld [vmem:[%s0 + $0x8] sm:$0xff]
  %vm10 = vcmask 23552
  %11 = vst.msk [vmem:[%s1] sm:$0xff] %vm10, %v8
  %12 = vst.msk [vmem:[%s1 + $0x8] sm:$0xff] %vm10, %v9
  // Predicated region
  $region6: #{lgb_module_forward.1} parent=0 // pred_check
    _
  $region7: #{lgb_module_forward.1} parent=0 // pred_check_branch
    %14 = sbr.rel (0) target = $region9
  $region8: #{lgb_module_forward.1} parent=0 // pred_region
    _
  $region9: #{lgb_module_forward.1} parent=0 // pred_fallthru
    _
  // Predicated region
  $region10: #{lgb_module_forward.1} parent=0 // pred_check
    _
  $region11: #{lgb_module_forward.1} parent=0 // pred_check_branch
    %16 = sbr.rel (0) target = $region13
  $region12: #{lgb_module_forward.1} parent=0 // pred_region
    _
  $region13: #{lgb_module_forward.1} parent=0 // pred_fallthru
    _

</llo_original>
